<compile_context>
chip_gen: v6e
topology: v6e:2x2x1
jax: 0.10.0
libtpu: 0.0.40
codegen_flags: <defaults>
</compile_context>

<pallas_src>
import functools

import jax
import jax.numpy as jnp
from jax.experimental import pallas as pl
from jax.experimental.pallas import tpu as pltpu

EPS = 1e-5


def _iln_kernel(x_ref, p_ref, o_ref, *, hw, c):
    # x_ref block: (Bn, C, HWp) ; p_ref: (3, C, 1) = [gamma*rho0, gamma*rho1, beta]
    x = x_ref[...]
    xf = x.astype(jnp.float32)

    # ---- one-pass per-(n, c) sums over the spatial (lane) axis ----
    s1 = jnp.sum(xf, axis=2, keepdims=True)          # (Bn, C, 1)
    s2 = jnp.sum(xf * xf, axis=2, keepdims=True)     # (Bn, C, 1)

    in_mean = s1 * (1.0 / hw)
    in_var = (s2 - s1 * in_mean) * (1.0 / max(hw - 1, 1))        # unbiased
    inv_in = jax.lax.rsqrt(in_var + EPS)                          # (Bn, C, 1)

    # ---- layer-norm stats derived from per-channel sums (no 2nd pass) ----
    chw = c * hw
    ls1 = jnp.sum(s1, axis=1, keepdims=True)          # (Bn, 1, 1)
    ls2 = jnp.sum(s2, axis=1, keepdims=True)          # (Bn, 1, 1)
    ln_mean = ls1 * (1.0 / chw)
    ln_var = (ls2 - ls1 * ln_mean) * (1.0 / max(chw - 1, 1))      # unbiased
    inv_ln = jax.lax.rsqrt(ln_var + EPS)                          # (Bn, 1, 1)

    # ---- fused per-(n, c) affine: out = x * scale + bias ----
    p = p_ref[...].astype(jnp.float32)                # (3, C, 1)
    a = p[0:1]                                        # gamma * rho0  (1, C, 1)
    b = p[1:2]                                        # gamma * rho1  (1, C, 1)
    beta = p[2:3]                                     # beta          (1, C, 1)

    scale = a * inv_in + b * inv_ln                                   # (Bn, C, 1)
    bias = beta - (a * (in_mean * inv_in) + b * (ln_mean * inv_ln))   # (Bn, C, 1)

    o_ref[...] = (xf * scale + bias).astype(o_ref.dtype)


def iln_forward(x_nchw, rho, gamma, beta):
    """x_nchw: (N, C, H, W); rho: (1, C, 2); gamma/beta: (1, C, 1, 1)."""
    N, C, H, W = x_nchw.shape
    HW = H * W
    x = x_nchw.reshape(N, C, HW)

    # Pad spatial to a lane-dense multiple of 128; zeros don't affect sum/sumsq
    # and the true HW is used for the divisors. Padded lanes are sliced off.
    HWp = max(128, ((HW + 127) // 128) * 128)
    if HWp != HW:
        x = jnp.pad(x, ((0, 0), (0, 0), (0, HWp - HW)))

    # Precompute rho softmax and fold gamma into the per-channel mixing weights.
    rho_sm = jax.nn.softmax(rho.astype(jnp.float32), axis=2)   # (1, C, 2)
    g = gamma.reshape(1, C).astype(jnp.float32)
    a = (g * rho_sm[:, :, 0])[0]                               # (C,)
    b = (g * rho_sm[:, :, 1])[0]                               # (C,)
    bt = beta.reshape(1, C).astype(jnp.float32)[0]             # (C,)
    params = jnp.stack([a, b, bt], axis=0).reshape(3, C, 1)    # (3, C, 1)

    # Choose Bn (batch elements per block): block ~<= 2 MiB, prefer a divisor of
    # N (no ragged boundary blocks), and keep grid >= 2 so both v7x TCs run.
    per_n_bytes = C * HWp * x.dtype.itemsize
    target_bytes = 2 * 1024 * 1024
    bn_cap = max(1, min(N, target_bytes // max(per_n_bytes, 1)))
    bn = 1
    for d in range(min(bn_cap, N), 0, -1):
        if N % d == 0 and (N < 2 or N // d >= 2):
            bn = d
            break
    grid_n = N // bn
    # TODO(synk): for very large C*HW where even a (1, C, HWp) block exceeds the
    # VMEM budget (notably v7x's 64 MiB), add an HW-tiled two-phase path
    # (accumulate per-channel sum/sumsq, then apply the fused scale/bias).

    kernel = functools.partial(_iln_kernel, hw=HW, c=C)
    out = pl.pallas_call(
        kernel,
        out_shape=jax.ShapeDtypeStruct((N, C, HWp), x.dtype),
        grid_spec=pltpu.PrefetchScalarGridSpec(
            num_scalar_prefetch=0,
            grid=(grid_n,),
            in_specs=[
                pl.BlockSpec((bn, C, HWp), lambda n: (n, 0, 0)),
                pl.BlockSpec((3, C, 1), lambda n: (0, 0, 0)),
            ],
            out_specs=pl.BlockSpec((bn, C, HWp), lambda n: (n, 0, 0)),
        ),
        compiler_params=pltpu.CompilerParams(
            dimension_semantics=("parallel",),
            vmem_limit_bytes=32 * 1024 * 1024,
        ),
    )(x, params)

    out = out[:, :, :HW].reshape(N, C, H, W)
    return out


def iln_reference(x, rho, gamma, beta):
    # Pure-JAX reference matching the PyTorch forward (unbiased variances).
    N, C, H, W = x.shape
    xf = x.astype(jnp.float32)
    in_mean = jnp.mean(xf, axis=(2, 3), keepdims=True)
    in_var = jnp.sum((xf - in_mean) ** 2, axis=(2, 3), keepdims=True) / (H * W - 1)
    out_in = (xf - in_mean) / jnp.sqrt(in_var + EPS)
    ln_mean = jnp.mean(xf, axis=(1, 2, 3), keepdims=True)
    ln_var = jnp.sum((xf - ln_mean) ** 2, axis=(1, 2, 3), keepdims=True) / (C * H * W - 1)
    out_ln = (xf - ln_mean) / jnp.sqrt(ln_var + EPS)
    rho_sm = jax.nn.softmax(rho.astype(jnp.float32), axis=2)
    rho0 = rho_sm[:, :, 0].reshape(1, C, 1, 1)
    rho1 = rho_sm[:, :, 1].reshape(1, C, 1, 1)
    out = rho0 * out_in + rho1 * out_ln
    return out * gamma + beta


if __name__ == "__main__":
    key = jax.random.PRNGKey(0)
    N, C, H, W = 2, 4, 16, 16

    x = jax.random.normal(key, (N, C, H, W), dtype=jnp.float32)

    # Deterministic parameter init per ILN.__init__ (using_bn=False):
    rho = jnp.concatenate(
        [jnp.full((1, C, 1), 1.0, jnp.float32),
         jnp.full((1, C, 1), 3.2, jnp.float32)], axis=2)          # (1, C, 2)
    gamma = jnp.ones((1, C, 1, 1), jnp.float32)
    beta = jnp.zeros((1, C, 1, 1), jnp.float32)

    out = iln_forward(x, rho, gamma, beta)
    out = jax.block_until_ready(out)

    ref = iln_reference(x, rho, gamma, beta)
    assert out.shape == (N, C, H, W)
    assert jnp.allclose(out, ref, atol=1e-4, rtol=1e-4), "mismatch vs reference"

    print("KERNEL_OK")
</pallas_src>

<mosaic_0001>
module attributes {stable_mosaic.version = 11 : i64} {
  func.func @_iln_kernel(%arg0: i32, %arg1: memref<1x4x256xf32, #tpu.memory_space<vmem>>, %arg2: memref<3x4x1xf32, #tpu.memory_space<vmem>>, %arg3: memref<1x4x256xf32, #tpu.memory_space<vmem>>) attributes {dimension_semantics = [#tpu.dimension_semantics<parallel>], iteration_bounds = array<i64: 2>, scalar_prefetch = 0 : i64, scratch_operands = 0 : i64, tpu.core_type = #tpu.core_type<tc>, window_params = [{transform_indices = @transform_0, window_bounds = array<i64: 1, 4, 256>}, {pipeline_mode = #tpu.pipeline_mode<synchronous>, transform_indices = @transform_1, window_bounds = array<i64: 3, 4, 1>}, {transform_indices = @transform_2, window_bounds = array<i64: 1, 4, 256>}]} {
    %c0 = arith.constant 0 : index
    %c0_0 = arith.constant 0 : index
    %c0_1 = arith.constant 0 : index
    %0 = vector.load %arg1[%c0, %c0_0, %c0_1] : memref<1x4x256xf32, #tpu.memory_space<vmem>>, vector<1x4x256xf32>
    %cst = arith.constant dense<0.000000e+00> : vector<1x4xf32>
    %1 = vector.multi_reduction <add>, %0, %cst [2] : vector<1x4x256xf32> to vector<1x4xf32>
    %2 = vector.shape_cast %1 : vector<1x4xf32> to vector<1x4x1xf32>
    %3 = arith.mulf %0, %0 : vector<1x4x256xf32>
    %cst_2 = arith.constant dense<0.000000e+00> : vector<1x4xf32>
    %4 = vector.multi_reduction <add>, %3, %cst_2 [2] : vector<1x4x256xf32> to vector<1x4xf32>
    %5 = vector.shape_cast %4 : vector<1x4xf32> to vector<1x4x1xf32>
    %cst_3 = arith.constant 3.906250e-03 : f32
    %6 = vector.broadcast %cst_3 : f32 to vector<1x4x1xf32>
    %7 = arith.mulf %2, %6 : vector<1x4x1xf32>
    %8 = arith.mulf %2, %7 : vector<1x4x1xf32>
    %9 = arith.subf %5, %8 : vector<1x4x1xf32>
    %cst_4 = arith.constant 0.00392156886 : f32
    %10 = vector.broadcast %cst_4 : f32 to vector<1x4x1xf32>
    %11 = arith.mulf %9, %10 : vector<1x4x1xf32>
    %cst_5 = arith.constant 9.99999974E-6 : f32
    %12 = vector.broadcast %cst_5 : f32 to vector<1x4x1xf32>
    %13 = arith.addf %11, %12 : vector<1x4x1xf32>
    %14 = math.rsqrt %13 : vector<1x4x1xf32>
    %cst_6 = arith.constant dense<0.000000e+00> : vector<1x1xf32>
    %15 = vector.multi_reduction <add>, %2, %cst_6 [1] : vector<1x4x1xf32> to vector<1x1xf32>
    %16 = vector.shape_cast %15 : vector<1x1xf32> to vector<1x1x1xf32>
    %cst_7 = arith.constant dense<0.000000e+00> : vector<1x1xf32>
    %17 = vector.multi_reduction <add>, %5, %cst_7 [1] : vector<1x4x1xf32> to vector<1x1xf32>
    %18 = vector.shape_cast %17 : vector<1x1xf32> to vector<1x1x1xf32>
    %cst_8 = arith.constant 9.765625E-4 : f32
    %19 = vector.broadcast %cst_8 : f32 to vector<1x1x1xf32>
    %20 = arith.mulf %16, %19 : vector<1x1x1xf32>
    %21 = arith.mulf %16, %20 : vector<1x1x1xf32>
    %22 = arith.subf %18, %21 : vector<1x1x1xf32>
    %cst_9 = arith.constant 9.77517105E-4 : f32
    %23 = vector.broadcast %cst_9 : f32 to vector<1x1x1xf32>
    %24 = arith.mulf %22, %23 : vector<1x1x1xf32>
    %cst_10 = arith.constant 9.99999974E-6 : f32
    %25 = vector.broadcast %cst_10 : f32 to vector<1x1x1xf32>
    %26 = arith.addf %24, %25 : vector<1x1x1xf32>
    %27 = math.rsqrt %26 : vector<1x1x1xf32>
    %c0_11 = arith.constant 0 : index
    %c0_12 = arith.constant 0 : index
    %c0_13 = arith.constant 0 : index
    %28 = vector.load %arg2[%c0_11, %c0_12, %c0_13] : memref<3x4x1xf32, #tpu.memory_space<vmem>>, vector<3x4x1xf32>
    %29 = vector.extract_strided_slice %28 {offsets = [0, 0, 0], sizes = [1, 4, 1], strides = [1, 1, 1]} : vector<3x4x1xf32> to vector<1x4x1xf32>
    %30 = vector.extract_strided_slice %28 {offsets = [1, 0, 0], sizes = [1, 4, 1], strides = [1, 1, 1]} : vector<3x4x1xf32> to vector<1x4x1xf32>
    %31 = vector.extract_strided_slice %28 {offsets = [2, 0, 0], sizes = [1, 4, 1], strides = [1, 1, 1]} : vector<3x4x1xf32> to vector<1x4x1xf32>
    %32 = arith.mulf %29, %14 : vector<1x4x1xf32>
    %33 = vector.broadcast %27 : vector<1x1x1xf32> to vector<1x4x1xf32>
    %34 = arith.mulf %30, %33 : vector<1x4x1xf32>
    %35 = arith.addf %32, %34 : vector<1x4x1xf32>
    %36 = arith.mulf %7, %14 : vector<1x4x1xf32>
    %37 = arith.mulf %29, %36 : vector<1x4x1xf32>
    %38 = arith.mulf %20, %27 : vector<1x1x1xf32>
    %39 = vector.broadcast %38 : vector<1x1x1xf32> to vector<1x4x1xf32>
    %40 = arith.mulf %30, %39 : vector<1x4x1xf32>
    %41 = arith.addf %37, %40 : vector<1x4x1xf32>
    %42 = arith.subf %31, %41 : vector<1x4x1xf32>
    %43 = vector.broadcast %35 : vector<1x4x1xf32> to vector<1x4x256xf32>
    %44 = arith.mulf %0, %43 : vector<1x4x256xf32>
    %45 = vector.broadcast %42 : vector<1x4x1xf32> to vector<1x4x256xf32>
    %46 = arith.addf %44, %45 : vector<1x4x256xf32>
    %c0_14 = arith.constant 0 : index
    %c0_15 = arith.constant 0 : index
    %c0_16 = arith.constant 0 : index
    %47 = vector.load %arg3[%c0_14, %c0_15, %c0_16] : memref<1x4x256xf32, #tpu.memory_space<vmem>>, vector<1x4x256xf32>
    tpu.vector_store %arg3[%c0_14, %c0_15, %c0_16], %46 {strides = array<i32>} : memref<1x4x256xf32, #tpu.memory_space<vmem>>, vector<1x4x256xf32>,
    return
  }
  func.func @transform_0(%arg0: i32) -> (i32, i32, i32) {
    %c0_i32 = arith.constant 0 : i32
    %c0_i32_0 = arith.constant 0 : i32
    %c0_i32_1 = arith.constant 0 : i32
    return %arg0, %c0_i32, %c0_i32_0 : i32, i32, i32
  }
  func.func @transform_1(%arg0: i32) -> (i32, i32, i32) {
    %c0_i32 = arith.constant 0 : i32
    %c0_i32_0 = arith.constant 0 : i32
    %c0_i32_1 = arith.constant 0 : i32
    %c0_i32_2 = arith.constant 0 : i32
    return %c0_i32, %c0_i32_0, %c0_i32_1 : i32, i32, i32
  }
  func.func @transform_2(%arg0: i32) -> (i32, i32, i32) {
    %c0_i32 = arith.constant 0 : i32
    %c0_i32_0 = arith.constant 0 : i32
    %c0_i32_1 = arith.constant 0 : i32
    return %arg0, %c0_i32, %c0_i32_0 : i32, i32, i32
  }
}

</mosaic_0001>

<llo_original>
// kernel: tpu_custom_call.1
$region0: #{tpu_custom_call.1}
  #allocation0 [shape = 'u32[]', space=smem, size = 0x4, offset = 0x4, fixed_abs, tag = 'smem constant byte address 0x4 - core index']
  #allocation1 [shape = 'u32[144,128]{1,0:T(1,128)}', space=vmem, size = 0x12000, scoped, tag = 'internal scratch']
  %s0 = inlined_call_operand.hbm [shape: f32[2,4,256], index: 0, kind: input, shape index: {}]
  %s1 = inlined_call_operand.vmem [shape: f32[3,4,1], index: 1, kind: input, shape index: {}]
  %s2 = inlined_call_operand.hbm [shape: f32[2,4,256], index: 2, kind: output, shape index: {}]
  %s3 = sld [smem:[#allocation0]]
  $region45: #{tpu_custom_call.1} parent=0
    _
  %s5 = ssub.s32 1, %s3
  %s6 = scalar_select 0, %s5, %s3
  $region1: #{tpu_custom_call.1} parent=0
    #allocation2 [shape = 'u8[8192]{0}', space=vmem, size = 0x2000, scoped, tag = 'input window, operand 0']
    #allocation3 [shape = 's32[2]{0}', space=sflag, size = 0x8, scoped, tag = 'scoped memory for tpu_custom_call.1']
    #allocation4 [shape = 's32[2]{0}', space=sflag, size = 0x8, scoped, tag = 'scoped memory for tpu_custom_call.1']
    #allocation5 [shape = 'u8[8192]{0}', space=vmem, size = 0x2000, scoped, tag = 'output window, operand 0']
    %7 = vsyncpa [#allocation3], 0
    %s8 = scalar_lea.sflag [#allocation3], 1
    %9 = vsyncpa %s8, 0
    %10 = vsyncpa [#allocation4], 0
    %s11 = scalar_lea.sflag [#allocation4], 1
    %12 = vsyncpa %s11, 0
    loop: start=0, step=1, limit=4
    $region2: #{tpu_custom_call.1} parent=1 // loop_pre_header
      _
    $region3: #{tpu_custom_call.1} parent=1 // loop_header
      %s14 = sphi 0, %s18
      %p15 = scmp.ge.s32.totalorder %s14, 4
      %s24 = sphi 0, %s26
      %s27 = sphi 0, %s24
      %s28 = sphi 0, %s27
      %s44 = sphi 0, %s28
      %s48 = sphi 0, %s48
      %s50 = sphi 0, %s48
      %s51 = sphi 0, %s50
      %s65 = sphi 0, %s51
      %s71 = sphi 0, %s73
      %s74 = sphi 0, %s71
      %s75 = sphi 0, %s74
      %s91 = sphi 0, %s75
    $region4: #{tpu_custom_call.1} parent=1 // loop_header_branch
      %17 = sbr.rel (%p15) target = $region8
    $region5: #{tpu_custom_call.1} parent=1 // loop_body
      %s19 = ssub.s32 %s14, 1
      %s20 = ssub.s32 %s14, 2
      %s21 = sadd.s32 %s14, 1
      %s22 = ssub.s32 %s14, %s21
      %p23 = scmp.eq.s32.totalorder %s22, 0
      %s25 = sadd.s32 %s24, 1
      %s26 = scalar_select %p23, %s24, %s25
      %p29 = pneg %p23
      %p30 = scmp.eq.s32.totalorder %s14, 1
      %p31 = por %p29, %p30
      %p32 = scmp.ne.s32.totalorder %s24, %s27
      %p33 = scmp.eq.s32.totalorder %s14, 0
      %p34 = por %p32, %p33
      %p35 = scmp.ne.s32.totalorder %s24, %s27
      %p36 = scmp.eq.s32.totalorder %s19, 1
      %p37 = por %p35, %p36
      %p38 = scmp.ne.s32.totalorder %s27, %s28
      %p39 = scmp.eq.s32.totalorder %s19, 0
      %p40 = por %p38, %p39
      %p41 = scmp.ne.s32.totalorder %s27, %s28
      %p42 = scmp.eq.s32.totalorder %s20, 1
      %p43 = por %p41, %p42
      %p45 = scmp.ne.s32.totalorder %s28, %s44
      %p46 = scmp.eq.s32.totalorder %s20, 0
      %p47 = por %p45, %p46
      %s49 = sadd.s32 %s48, 1
      %p52 = scmp.eq.s32.totalorder %s14, 1
      %p53 = scmp.ne.s32.totalorder %s48, %s50
      %p54 = scmp.eq.s32.totalorder %s14, 0
      %p55 = por %p53, %p54
      %p56 = scmp.ne.s32.totalorder %s48, %s50
      %p57 = scmp.eq.s32.totalorder %s19, 1
      %p58 = por %p56, %p57
      %p59 = scmp.ne.s32.totalorder %s50, %s51
      %p60 = scmp.eq.s32.totalorder %s19, 0
      %p61 = por %p59, %p60
      %p62 = scmp.ne.s32.totalorder %s50, %s51
      %p63 = scmp.eq.s32.totalorder %s20, 1
      %p64 = por %p62, %p63
      %p66 = scmp.ne.s32.totalorder %s51, %s65
      %p67 = scmp.eq.s32.totalorder %s20, 0
      %p68 = por %p66, %p67
      %s69 = ssub.s32 %s14, %s21
      %p70 = scmp.eq.s32.totalorder %s69, 0
      %s72 = sadd.s32 %s71, 1
      %s73 = scalar_select %p70, %s71, %s72
      %p76 = pneg %p70
      %p77 = scmp.eq.s32.totalorder %s14, 1
      %p78 = por %p76, %p77
      %p79 = scmp.ne.s32.totalorder %s71, %s74
      %p80 = scmp.eq.s32.totalorder %s14, 0
      %p81 = por %p79, %p80
      %p82 = scmp.ne.s32.totalorder %s71, %s74
      %p83 = scmp.eq.s32.totalorder %s19, 1
      %p84 = por %p82, %p83
      %p85 = scmp.ne.s32.totalorder %s74, %s75
      %p86 = scmp.eq.s32.totalorder %s19, 0
      %p87 = por %p85, %p86
      %p88 = scmp.ne.s32.totalorder %s74, %s75
      %p89 = scmp.eq.s32.totalorder %s20, 1
      %p90 = por %p88, %p89
      %p92 = scmp.ne.s32.totalorder %s75, %s91
      %p93 = scmp.eq.s32.totalorder %s20, 0
      %p94 = por %p92, %p93
      %p95 = scmp.le.s32.totalorder 1, %s14
      %p96 = scmp.lt.s32.totalorder %s14, 3
      %p97 = pnand %p95, %p96
      %p98 = pneg %p97
      // Predicated region
      $region9: #{tpu_custom_call.1} parent=5 // pred_check
        _
      $region10: #{tpu_custom_call.1} parent=5 // pred_check_branch
        %100 = sbr.rel (%p97) target = $region12
      $region11: #{tpu_custom_call.1} parent=5 // pred_region
        %s101 = ssub.s32 %s14, 1
        // Predicated region
        $region13: #{tpu_custom_call.1} parent=11 // pred_check
          %p102 = pneg %p61
        $region14: #{tpu_custom_call.1} parent=11 // pred_check_branch
          %104 = sbr.rel (%p102) target = $region16
        $region15: #{tpu_custom_call.1} parent=11 // pred_region
          _
        $region16: #{tpu_custom_call.1} parent=11 // pred_fallthru
          _
      $region12: #{tpu_custom_call.1} parent=5 // pred_fallthru
        _
      %p105 = scmp.lt.s32.totalorder %s14, 2
      // Predicated region
      $region17: #{tpu_custom_call.1} parent=5 // pred_check
        %p106 = pneg %p105
      $region18: #{tpu_custom_call.1} parent=5 // pred_check_branch
        %108 = sbr.rel (%p106) target = $region20
      $region19: #{tpu_custom_call.1} parent=5 // pred_region
        // Predicated region
        $region21: #{tpu_custom_call.1} parent=19 // pred_check
          %p109 = pneg %p34
        $region22: #{tpu_custom_call.1} parent=19 // pred_check_branch
          %111 = sbr.rel (%p109) target = $region24
        $region23: #{tpu_custom_call.1} parent=19 // pred_region
          %s112 = sand.u32 %s24, 1
          %s113 = scalar_lea.sflag [#allocation3], %s112
          %s114 = sand.u32 %s24, 1
          %s115 = smul.addr %s114, 8
          %s116 = scalar_lea.vmem [#allocation2], %s115
          %s118 = ssub.s32 128, 128
          %119 = vsyncadd %s113, %s118
          %s120 = smul.addr %s14, 2
          %s121 = smul.addr %s120, 64
          %s122 = scalar_lea.hbm %s0, %s121
          %s124 = sshll.u32 %s116, 4
          %s125 = int_to_ptr.vmem [resolvable:$true] %s124
          %127 = dma.hbm_to_vmem [thread:$0]  %s122, 128, %s125, %s113
        $region24: #{tpu_custom_call.1} parent=19 // pred_fallthru
          _
      $region20: #{tpu_custom_call.1} parent=5 // pred_fallthru
        _
      %p128 = scmp.le.s32.totalorder 1, %s14
      %p129 = scmp.lt.s32.totalorder %s14, 3
      %p130 = pnand %p128, %p129
      %p131 = pneg %p130
      // Predicated region
      $region25: #{tpu_custom_call.1} parent=5 // pred_check
        _
      $region26: #{tpu_custom_call.1} parent=5 // pred_check_branch
        %133 = sbr.rel (%p130) target = $region28
      $region27: #{tpu_custom_call.1} parent=5 // pred_region
        %s134 = ssub.s32 %s14, 1
        %s135 = sand.u32 %s27, 1
        %s136 = scalar_lea.sflag [#allocation3], %s135
        %s137 = sand.u32 %s27, 1
        %s138 = smul.addr %s137, 8
        %s139 = scalar_lea.vmem [#allocation2], %s138
        // Predicated region
        $region29: #{tpu_custom_call.1} parent=27 // pred_check
          %p140 = pneg %p40
        $region30: #{tpu_custom_call.1} parent=27 // pred_check_branch
          %142 = sbr.rel (%p140) target = $region32
        $region31: #{tpu_custom_call.1} parent=27 // pred_region
          %143 = dma.done %s136, 128
        $region32: #{tpu_custom_call.1} parent=27 // pred_fallthru
          _
        %s144 = sand.u32 %s27, 1
        %s145 = scalar_lea.sflag [#allocation3], %s144
        %s146 = sand.u32 %s27, 1
        %s147 = smul.addr %s146, 8
        %s148 = scalar_lea.vmem [#allocation2], %s147
        %p149 = pneg %p40
        %p150 = pneg %p37
        %p151 = pneg %p61
        %p152 = pneg %p58
        %p153 = pneg %p87
        %p154 = pneg %p84
        %s155 = sand.u32 %s74, 1
        %s156 = scalar_lea.sflag [#allocation4], %s155
        %s157 = sand.u32 %s74, 1
        %s158 = smul.addr %s157, 8
        %s159 = scalar_lea.vmem [#allocation5], %s158
        %v160 = vld [vmem:[%s139] sm:$0xff]
        %v162 = vcombine.high %v160, %v160
        %vm164 = vcmask 1043456
        %v165 = vsel %vm164, %v160, 0.0
        %v166 = vsel %vm164, %v162, 0.0
        %v167 = vadd.f32 %v165, %v166
        %168 = vadd.xlane.f32.xlu0 %v167
        %v169 = vpop.xlane.xlu0 %168
        %v170 = vmul.f32 %v160, %v160
        %v172 = vcombine.high %v170, %v170
        %v174 = vsel %vm164, %v170, 0.0
        %v175 = vsel %vm164, %v172, 0.0
        %v176 = vadd.f32 %v174, %v175
        %177 = vadd.xlane.f32.xlu0 %v176
        %v178 = vpop.xlane.xlu0 %177
        %v179 = vmul.f32 %v169, 0.00390625
        %v180 = vmul.f32 %v169, %v179
        %v181 = vsub.f32 %v178, %v180
        %v182 = vmul.f32 %v181, 0.003921569
        %v183 = vadd.f32 %v182, 1e-05
        %v184 = vrsqrt.pop %v183
        %v185 = vsel %vm164, %v169, 0.0
        %v186 = vrot.slane %v185, 4
        %v187 = vadd.f32 %v185, %v186
        %v188 = vrot.slane %v187, 2
        %v189 = vadd.f32 %v187, %v188
        %v190 = vrot.slane %v189, 1
        %v191 = vadd.f32 %v189, %v190
        %v192 = vsel %vm164, %v178, 0.0
        %v193 = vrot.slane %v192, 4
        %v194 = vadd.f32 %v192, %v193
        %v195 = vrot.slane %v194, 2
        %v196 = vadd.f32 %v194, %v195
        %v197 = vrot.slane %v196, 1
        %v198 = vadd.f32 %v196, %v197
        %v199 = vmul.f32 %v191, 0.0009765625
        %v200 = vmul.f32 %v191, %v199
        %v201 = vsub.f32 %v198, %v200
        %v202 = vmul.f32 %v201, 0.0009775171
        %v203 = vadd.f32 %v202, 1e-05
        %v204 = vrsqrt.pop %v203
        %v205 = vld [vmem:[%s1] sm:$0xf]
        %v206 = vld [vmem:[%s1 + $0x4] sm:$0xf]
        %v207 = vld [vmem:[%s1 + $0x8] sm:$0xf]
        %v208 = vmul.f32 %v205, %v184
        %v209 = vmul.f32 %v206, %v204
        %v210 = vadd.f32 %v208, %v209
        %v211 = vmul.f32 %v179, %v184
        %v212 = vmul.f32 %v205, %v211
        %v213 = vmul.f32 %v199, %v204
        %v214 = vmul.f32 %v206, %v213
        %v215 = vadd.f32 %v212, %v214
        %v216 = vsub.f32 %v207, %v215
        %218 = vset.pattern.permute.xlu0 0
        %219 = vperm.xlu0 %218, %v210
        %v220 = vpop.permute.xlu0 %219
        %v222 = vunpack.c.l.s4 839922192
        %v223 = vunpack.c.0.s8 %v222
        %v224 = vlaneseq
        %v225 = vshrl.u32 %v224, 7
        %v226 = vsub.s32 %v223, %v225
        %v227 = vrot.slane %v220, %v226
        %v229 = vmul.f32 %v160, %v227
        %231 = vset.pattern.permute.xlu0 0
        %232 = vperm.xlu0 %231, %v216
        %v233 = vpop.permute.xlu0 %232
        %v235 = vunpack.c.l.s4 839922192
        %v236 = vunpack.c.0.s8 %v235
        %v237 = vlaneseq
        %v238 = vshrl.u32 %v237, 7
        %v239 = vsub.s32 %v236, %v238
        %v240 = vrot.slane %v233, %v239
        %v242 = vadd.f32 %v229, %v240
        %243 = vst [vmem:[%s159] sm:$0xff] %v242
        %s244 = sand.u32 %s74, 1
        %s245 = scalar_lea.sflag [#allocation4], %s244
        %s246 = sand.u32 %s74, 1
        %s247 = smul.addr %s246, 8
        %s248 = scalar_lea.vmem [#allocation5], %s247
        // Predicated region
        $region33: #{tpu_custom_call.1} parent=27 // pred_check
          %p249 = pneg %p84
        $region34: #{tpu_custom_call.1} parent=27 // pred_check_branch
          %251 = sbr.rel (%p249) target = $region36
        $region35: #{tpu_custom_call.1} parent=27 // pred_region
          %s253 = ssub.s32 128, 128
          %254 = vsyncadd %s245, %s253
          %s255 = smul.addr %s19, 2
          %s256 = smul.addr %s255, 64
          %s257 = scalar_lea.hbm %s2, %s256
          %s259 = sshll.u32 %s248, 4
          %s260 = int_to_ptr.vmem [resolvable:$true] %s259
          %262 = dma.vmem_to_hbm [thread:$0]  %s260, 128, %s257, %s245
        $region36: #{tpu_custom_call.1} parent=27 // pred_fallthru
          _
      $region28: #{tpu_custom_call.1} parent=5 // pred_fallthru
        _
      %p263 = scmp.le.s32.totalorder 2, %s14
      // Predicated region
      $region37: #{tpu_custom_call.1} parent=5 // pred_check
        %p264 = pneg %p263
      $region38: #{tpu_custom_call.1} parent=5 // pred_check_branch
        %266 = sbr.rel (%p264) target = $region40
      $region39: #{tpu_custom_call.1} parent=5 // pred_region
        %s267 = ssub.s32 %s14, 2
        // Predicated region
        $region41: #{tpu_custom_call.1} parent=39 // pred_check
          %p268 = pneg %p90
        $region42: #{tpu_custom_call.1} parent=39 // pred_check_branch
          %270 = sbr.rel (%p268) target = $region44
        $region43: #{tpu_custom_call.1} parent=39 // pred_region
          %s271 = sand.u32 %s75, 1
          %s272 = scalar_lea.sflag [#allocation4], %s271
          %s273 = sand.u32 %s75, 1
          %s274 = smul.addr %s273, 8
          %s275 = scalar_lea.vmem [#allocation5], %s274
          %276 = dma.done %s272, 128
        $region44: #{tpu_custom_call.1} parent=39 // pred_fallthru
          _
      $region40: #{tpu_custom_call.1} parent=5 // pred_fallthru
        _
    $region6: #{tpu_custom_call.1} parent=1 // loop_footer
      %s18 = sadd.s32 1, %s14
    $region7: #{tpu_custom_call.1} parent=1 // loop_footer_branch
      %13 = sbr.rel target = $region3
    $region8: #{tpu_custom_call.1} parent=1 // loop_exit
      _
    %277 = vsyncpa [#allocation3], 1
    %s278 = scalar_lea.sflag [#allocation3], 1
    %279 = vsyncpa %s278, 1
    %280 = vsyncpa [#allocation4], 1
    %s281 = scalar_lea.sflag [#allocation4], 1
    %282 = vsyncpa %s281, 1

</llo_original>
